<compile_context>
chip_gen: v6e
topology: v6e:2x2x1
jax: 0.10.0
libtpu: 0.0.40
codegen_flags: <defaults>
</compile_context>

<pallas_src>
import functools

import jax
import jax.numpy as jnp
from jax.experimental import pallas as pl
from jax.experimental.pallas import tpu as pltpu

_EPS = 1e-5
_LANE = 128
_SUBLANE = 8
_TARGET_BLOCK_BYTES = 2 * 1024 * 1024  # per input, per pipeline buffer


def _choose_block_rows(n_rows, n_cols):
    """Rows per grid step: ~2 MiB per input buffer, multiple of 8, <= n_rows."""
    lane_cols = ((n_cols + _LANE - 1) // _LANE) * _LANE
    br = (_TARGET_BLOCK_BYTES // (4 * lane_cols)) // _SUBLANE * _SUBLANE
    br = max(_SUBLANE, br)
    if n_rows < _SUBLANE:
        return int(n_rows)  # block equals the full (small) row dim
    return int(min(br, (n_rows // _SUBLANE) * _SUBLANE))


def _normalized_l1_kernel(a_ref, b_ref, o_ref, *, n_rows, eps, mask_rows):
    """One row tile: instance-normalize rows of a and b, emit lane-dense
    per-column partial sums of |norm(a) - norm(b)| for this tile."""
    br, n_cols = a_ref.shape

    a = a_ref[...].astype(jnp.float32)
    b = b_ref[...].astype(jnp.float32)

    if mask_rows:
        # Last row block may be partial: zero out-of-range rows BEFORE any
        # arithmetic so they contribute exactly 0 to the partial sums.
        row0 = pl.program_id(0) * br
        rid = row0 + jax.lax.broadcasted_iota(jnp.int32, (br, 1), 0)
        valid = rid < n_rows
        a = jnp.where(valid, a, 0.0)
        b = jnp.where(valid, b, 0.0)

    inv_n = jnp.float32(1.0 / n_cols)
    inv_nm1 = jnp.float32(1.0 / max(n_cols - 1, 1))  # unbiased var (torch .var)

    mean_a = jnp.sum(a, axis=1, keepdims=True) * inv_n
    mean_b = jnp.sum(b, axis=1, keepdims=True) * inv_n
    ca = a - mean_a
    cb = b - mean_b
    var_a = jnp.sum(ca * ca, axis=1, keepdims=True) * inv_nm1 + eps
    var_b = jnp.sum(cb * cb, axis=1, keepdims=True) * inv_nm1 + eps

    d = jnp.abs(ca * jax.lax.rsqrt(var_a) - cb * jax.lax.rsqrt(var_b))

    # Row-reduce (mostly vreg adds) -> (1, 1, L) lane-dense partial for this tile.
    o_ref[...] = jnp.sum(d, axis=0, keepdims=True)[None]


@jax.jit
def _stage_loss(feat1, feat2):
    assert feat1.shape == feat2.shape and feat1.ndim == 4
    n, c, h, w = feat1.shape
    n_rows = n * c
    n_cols = h * w

    a = feat1.reshape(n_rows, n_cols)
    b = feat2.reshape(n_rows, n_cols)

    br = _choose_block_rows(n_rows, n_cols)
    n_blocks = pl.cdiv(n_rows, br)

    # TODO(synk): spatial extents so large that a single (8, H*W) f32 row tile
    # no longer fits VMEM would need a two-pass (stats, then normalize) kernel.
    partials = pl.pallas_call(
        functools.partial(
            _normalized_l1_kernel,
            n_rows=n_rows,
            eps=_EPS,
            mask_rows=(n_rows % br) != 0,
        ),
        out_shape=jax.ShapeDtypeStruct((n_blocks, 1, n_cols), jnp.float32),
        grid_spec=pltpu.PrefetchScalarGridSpec(
            num_scalar_prefetch=0,
            grid=(n_blocks,),
            in_specs=[
                pl.BlockSpec((br, n_cols), lambda i: (i, 0)),
                pl.BlockSpec((br, n_cols), lambda i: (i, 0)),
            ],
            out_specs=pl.BlockSpec((1, 1, n_cols), lambda i: (i, 0, 0)),
        ),
        compiler_params=pltpu.CompilerParams(
            dimension_semantics=("parallel",),
        ),
    )(a, b)

    return jnp.sum(partials) / jnp.float32(n_rows * n_cols)


class NormalizedL1Loss:
    """JAX/Pallas port of the PyTorch NormalizedL1Loss module."""

    def __init__(self, net_conf):
        self.stages = net_conf.get("loss_cons_stages", [-1])

    def __call__(self, feats1, feats2):
        # TODO(synk): each stage is a separate pallas_call; fusing differently
        # shaped stages into one launch would need manual DMA over prefixed
        # offsets and is not worth it for typical stage counts.
        loss = jnp.float32(0.0)
        for stage in self.stages:
            loss = loss + _stage_loss(feats1[stage], feats2[stage])
        return loss


def _reference_loss(feats1, feats2, stages):
    """Pure-JAX reference with the exact PyTorch semantics."""
    total = jnp.float32(0.0)
    for s in stages:
        f1, f2 = feats1[s], feats2[s]
        n, c, _, _ = f1.shape

        def norm(f):
            x = f.reshape(n, c, -1).astype(jnp.float32)
            mean = x.mean(axis=2, keepdims=True)
            var = x.var(axis=2, ddof=1, keepdims=True) + _EPS
            return (x - mean) / jnp.sqrt(var)

        total = total + jnp.mean(jnp.abs(norm(f1) - norm(f2)))
    return total


if __name__ == "__main__":
    key = jax.random.PRNGKey(0)
    k1, k2, k3, k4 = jax.random.split(key, 4)

    # Two "stages" of NCHW feature maps (small shapes).
    feats1 = [
        jax.random.normal(k1, (2, 4, 16, 16), dtype=jnp.float32),
        jax.random.normal(k2, (2, 8, 8, 8), dtype=jnp.float32),
    ]
    feats2 = [
        jax.random.normal(k3, (2, 4, 16, 16), dtype=jnp.float32),
        jax.random.normal(k4, (2, 8, 8, 8), dtype=jnp.float32),
    ]

    net_conf = {"loss_cons_stages": [0, -1]}
    loss_mod = NormalizedL1Loss(net_conf)

    loss = loss_mod(feats1, feats2)
    jax.block_until_ready(loss)

    ref = _reference_loss(feats1, feats2, net_conf["loss_cons_stages"])
    assert jnp.allclose(loss, ref, rtol=1e-4, atol=1e-5), (loss, ref)

    print("KERNEL_OK")
</pallas_src>

<mosaic_0001>
module attributes {stable_mosaic.version = 11 : i64} {
  func.func @_normalized_l1_kernel(%arg0: i32, %arg1: memref<8x256xf32, #tpu.memory_space<vmem>>, %arg2: memref<8x256xf32, #tpu.memory_space<vmem>>, %arg3: memref<1x1x256xf32, #tpu.memory_space<vmem>>) attributes {dimension_semantics = [#tpu.dimension_semantics<parallel>], iteration_bounds = array<i64: 1>, scalar_prefetch = 0 : i64, scratch_operands = 0 : i64, tpu.core_type = #tpu.core_type<tc>, window_params = [{transform_indices = @transform_0, window_bounds = array<i64: 8, 256>}, {transform_indices = @transform_1, window_bounds = array<i64: 8, 256>}, {transform_indices = @transform_2, window_bounds = array<i64: 1, 1, 256>}]} {
    %c0 = arith.constant 0 : index
    %c0_0 = arith.constant 0 : index
    %0 = vector.load %arg1[%c0, %c0_0] : memref<8x256xf32, #tpu.memory_space<vmem>>, vector<8x256xf32>
    %c0_1 = arith.constant 0 : index
    %c0_2 = arith.constant 0 : index
    %1 = vector.load %arg2[%c0_1, %c0_2] : memref<8x256xf32, #tpu.memory_space<vmem>>, vector<8x256xf32>
    %cst = arith.constant dense<0.000000e+00> : vector<8xf32>
    %2 = vector.multi_reduction <add>, %0, %cst [1] : vector<8x256xf32> to vector<8xf32>
    %3 = vector.shape_cast %2 : vector<8xf32> to vector<8x1xf32>
    %cst_3 = arith.constant 3.906250e-03 : f32
    %4 = vector.broadcast %cst_3 : f32 to vector<8x1xf32>
    %5 = arith.mulf %3, %4 : vector<8x1xf32>
    %cst_4 = arith.constant dense<0.000000e+00> : vector<8xf32>
    %6 = vector.multi_reduction <add>, %1, %cst_4 [1] : vector<8x256xf32> to vector<8xf32>
    %7 = vector.shape_cast %6 : vector<8xf32> to vector<8x1xf32>
    %cst_5 = arith.constant 3.906250e-03 : f32
    %8 = vector.broadcast %cst_5 : f32 to vector<8x1xf32>
    %9 = arith.mulf %7, %8 : vector<8x1xf32>
    %10 = vector.broadcast %5 : vector<8x1xf32> to vector<8x256xf32>
    %11 = arith.subf %0, %10 : vector<8x256xf32>
    %12 = vector.broadcast %9 : vector<8x1xf32> to vector<8x256xf32>
    %13 = arith.subf %1, %12 : vector<8x256xf32>
    %14 = arith.mulf %11, %11 : vector<8x256xf32>
    %cst_6 = arith.constant dense<0.000000e+00> : vector<8xf32>
    %15 = vector.multi_reduction <add>, %14, %cst_6 [1] : vector<8x256xf32> to vector<8xf32>
    %16 = vector.shape_cast %15 : vector<8xf32> to vector<8x1xf32>
    %cst_7 = arith.constant 0.00392156886 : f32
    %17 = vector.broadcast %cst_7 : f32 to vector<8x1xf32>
    %18 = arith.mulf %16, %17 : vector<8x1xf32>
    %cst_8 = arith.constant 9.99999974E-6 : f32
    %19 = vector.broadcast %cst_8 : f32 to vector<8x1xf32>
    %20 = arith.addf %18, %19 : vector<8x1xf32>
    %21 = arith.mulf %13, %13 : vector<8x256xf32>
    %cst_9 = arith.constant dense<0.000000e+00> : vector<8xf32>
    %22 = vector.multi_reduction <add>, %21, %cst_9 [1] : vector<8x256xf32> to vector<8xf32>
    %23 = vector.shape_cast %22 : vector<8xf32> to vector<8x1xf32>
    %cst_10 = arith.constant 0.00392156886 : f32
    %24 = vector.broadcast %cst_10 : f32 to vector<8x1xf32>
    %25 = arith.mulf %23, %24 : vector<8x1xf32>
    %cst_11 = arith.constant 9.99999974E-6 : f32
    %26 = vector.broadcast %cst_11 : f32 to vector<8x1xf32>
    %27 = arith.addf %25, %26 : vector<8x1xf32>
    %28 = math.rsqrt %20 : vector<8x1xf32>
    %29 = vector.broadcast %28 : vector<8x1xf32> to vector<8x256xf32>
    %30 = arith.mulf %11, %29 : vector<8x256xf32>
    %31 = math.rsqrt %27 : vector<8x1xf32>
    %32 = vector.broadcast %31 : vector<8x1xf32> to vector<8x256xf32>
    %33 = arith.mulf %13, %32 : vector<8x256xf32>
    %34 = arith.subf %30, %33 : vector<8x256xf32>
    %35 = math.absf %34 : vector<8x256xf32>
    %cst_12 = arith.constant dense<0.000000e+00> : vector<256xf32>
    %36 = vector.multi_reduction <add>, %35, %cst_12 [0] : vector<8x256xf32> to vector<256xf32>
    %37 = vector.shape_cast %36 : vector<256xf32> to vector<1x256xf32>
    %38 = vector.shape_cast %37 : vector<1x256xf32> to vector<1x1x256xf32>
    %c0_13 = arith.constant 0 : index
    %c0_14 = arith.constant 0 : index
    %c0_15 = arith.constant 0 : index
    %39 = vector.load %arg3[%c0_13, %c0_14, %c0_15] : memref<1x1x256xf32, #tpu.memory_space<vmem>>, vector<1x1x256xf32>
    tpu.vector_store %arg3[%c0_13, %c0_14, %c0_15], %38 {strides = array<i32>} : memref<1x1x256xf32, #tpu.memory_space<vmem>>, vector<1x1x256xf32>,
    return
  }
  func.func @transform_0(%arg0: i32) -> (i32, i32) {
    %c0_i32 = arith.constant 0 : i32
    %c0_i32_0 = arith.constant 0 : i32
    return %arg0, %c0_i32 : i32, i32
  }
  func.func @transform_1(%arg0: i32) -> (i32, i32) {
    %c0_i32 = arith.constant 0 : i32
    %c0_i32_0 = arith.constant 0 : i32
    return %arg0, %c0_i32 : i32, i32
  }
  func.func @transform_2(%arg0: i32) -> (i32, i32, i32) {
    %c0_i32 = arith.constant 0 : i32
    %c0_i32_0 = arith.constant 0 : i32
    %c0_i32_1 = arith.constant 0 : i32
    return %arg0, %c0_i32, %c0_i32_0 : i32, i32, i32
  }
}

</mosaic_0001>

<llo_original>
// kernel: _stage_loss.1
$region0: #{_stage_loss.1}
  #allocation0 [shape = 'u32[]', space=smem, size = 0x4, offset = 0x4, fixed_abs, tag = 'smem constant byte address 0x4 - core index']
  #allocation1 [shape = 'u32[144,128]{1,0:T(1,128)}', space=vmem, size = 0x12000, scoped, tag = 'internal scratch']
  %s0 = inlined_call_operand.vmem [shape: f32[8,256], index: 0, kind: input, shape index: {}]
  %s1 = inlined_call_operand.vmem [shape: f32[8,256], index: 1, kind: input, shape index: {}]
  %s2 = inlined_call_operand.vmem [shape: f32[1,1,256], index: 2, kind: output, shape index: {}]
  %s3 = sld [smem:[#allocation0]]
  $region18: #{_stage_loss.1} parent=0
    _
  %s5 = ssub.s32 1, %s3
  %s6 = scalar_select 0, %s5, %s3
  // Predicated region
  $region2: #{_stage_loss.1} parent=0 // pred_check
    _
  $region3: #{_stage_loss.1} parent=0 // pred_check_branch
    %8 = sbr.rel (0) target = $region5
  $region4: #{_stage_loss.1} parent=0 // pred_region
    _
  $region5: #{_stage_loss.1} parent=0 // pred_fallthru
    _
  // Predicated region
  $region6: #{_stage_loss.1} parent=0 // pred_check
    _
  $region7: #{_stage_loss.1} parent=0 // pred_check_branch
    %10 = sbr.rel (0) target = $region9
  $region8: #{_stage_loss.1} parent=0 // pred_region
    _
  $region9: #{_stage_loss.1} parent=0 // pred_fallthru
    _
  %v11 = vld [vmem:[%s0] sm:$0xff]
  %v12 = vld [vmem:[%s0 + $0x8] sm:$0xff]
  %v13 = vld [vmem:[%s1] sm:$0xff]
  %v14 = vld [vmem:[%s1 + $0x8] sm:$0xff]
  %v15 = vadd.f32 %v11, %v12
  %16 = vadd.xlane.f32.xlu0 %v15
  %v17 = vpop.xlane.xlu0 %16
  %v18 = vmul.f32 %v17, 0.00390625
  %v19 = vadd.f32 %v13, %v14
  %20 = vadd.xlane.f32.xlu0 %v19
  %v21 = vpop.xlane.xlu0 %20
  %v22 = vmul.f32 %v21, 0.00390625
  %v23 = vsub.f32 %v11, %v18
  %v24 = vsub.f32 %v12, %v18
  %v25 = vsub.f32 %v13, %v22
  %v26 = vsub.f32 %v14, %v22
  %v27 = vmul.f32 %v23, %v23
  %v28 = vmul.f32 %v24, %v24
  %v29 = vadd.f32 %v27, %v28
  %30 = vadd.xlane.f32.xlu0 %v29
  %v31 = vpop.xlane.xlu0 %30
  %v32 = vmul.f32 %v31, 0.003921569
  %v33 = vadd.f32 %v32, 1e-05
  %v34 = vmul.f32 %v25, %v25
  %v35 = vmul.f32 %v26, %v26
  %v36 = vadd.f32 %v34, %v35
  %37 = vadd.xlane.f32.xlu0 %v36
  %v38 = vpop.xlane.xlu0 %37
  %v39 = vmul.f32 %v38, 0.003921569
  %v40 = vadd.f32 %v39, 1e-05
  %v41 = vrsqrt.pop %v33
  %v42 = vmul.f32 %v23, %v41
  %v43 = vmul.f32 %v24, %v41
  %v44 = vrsqrt.pop %v40
  %v45 = vmul.f32 %v25, %v44
  %v46 = vmul.f32 %v26, %v44
  %v47 = vsub.f32 %v42, %v45
  %v48 = vsub.f32 %v43, %v46
  %v49 = vand.u32 2147483647, %v47
  %v50 = vand.u32 2147483647, %v48
  %v51 = vrot.slane %v49, 4
  %v52 = vadd.f32 %v49, %v51
  %v53 = vrot.slane %v52, 2
  %v54 = vadd.f32 %v52, %v53
  %v55 = vrot.slane %v54, 1
  %v56 = vadd.f32 %v54, %v55
  %v57 = vrot.slane %v50, 4
  %v58 = vadd.f32 %v50, %v57
  %v59 = vrot.slane %v58, 2
  %v60 = vadd.f32 %v58, %v59
  %v61 = vrot.slane %v60, 1
  %v62 = vadd.f32 %v60, %v61
  %v65 = vcombine.low %v56, %v62
  %v67 = vunpack.c.l.s4 1966171168
  %v68 = vunpack.c.0.s8 %v67
  %v69 = vlaneseq
  %v70 = vshrl.u32 %v69, 7
  %v71 = vsub.s32 %v68, %v70
  %v72 = vrot.slane %v65, %v71
  %v74 = vunpack.c.l.s4 1966171168
  %v75 = vunpack.c.0.s8 %v74
  %v76 = vlaneseq
  %v77 = vshrl.u32 %v76, 7
  %v78 = vsub.s32 %v75, %v77
  %v79 = vrot.slane %v72, %v78
  %v81 = vlaneseq
  %vm82 = vcmp.ge.s32.totalorder %v81, 0
  %vm83 = vcmp.lt.s32.totalorder %v81, 256
  %vm84 = vmand %vm82, %vm83
  %85 = vst.msk [vmem:[%s2] sm:$0x3] %vm84, %v79
  // Predicated region
  $region10: #{_stage_loss.1} parent=0 // pred_check
    _
  $region11: #{_stage_loss.1} parent=0 // pred_check_branch
    %87 = sbr.rel (0) target = $region13
  $region12: #{_stage_loss.1} parent=0 // pred_region
    _
  $region13: #{_stage_loss.1} parent=0 // pred_fallthru
    _
  // Predicated region
  $region14: #{_stage_loss.1} parent=0 // pred_check
    _
  $region15: #{_stage_loss.1} parent=0 // pred_check_branch
    %89 = sbr.rel (0) target = $region17
  $region16: #{_stage_loss.1} parent=0 // pred_region
    _
  $region17: #{_stage_loss.1} parent=0 // pred_fallthru
    _

</llo_original>
